<compile_context>
chip_gen: v5e
topology: v5e:2x2
jax: 0.10.0
libtpu: 0.0.40
codegen_flags: <defaults>
</compile_context>

<pallas_src>
import jax
import jax.numpy as jnp
from jax.experimental import pallas as pl
from jax.experimental.pallas import tpu as pltpu  # noqa: F401  (TPU backend)


def _add3_kernel(a_ref, b_ref, c_ref, o_ref):
    # x449 = x448 + x433 ; x465 = x464 + x449  (same association order as spec)
    o_ref[...] = c_ref[...] + (a_ref[...] + b_ref[...])


def _dense_flat_shape(total):
    """Pick a sublane/lane-dense 2D packing for `total` elements."""
    # Prefer sublane dim of 8 (full vreg sublane occupancy); fall back to 1-row
    # only if the element count is not divisible by 8.
    if total % 8 == 0:
        return (8, total // 8)
    return (1, total)


def add3(x448, x433, x464):
    assert x448.shape == x433.shape == x464.shape
    assert x448.dtype == x433.dtype == x464.dtype
    orig_shape = x448.shape

    total = 1
    for d in orig_shape:
        total *= d
    flat_shape = _dense_flat_shape(total)  # (8, 1666) for 1*272*7*7

    # Contiguous (metadata-only) reshapes: elementwise op is layout-agnostic.
    a = x448.reshape(flat_shape)
    b = x433.reshape(flat_shape)
    c = x464.reshape(flat_shape)

    # Single block covering the whole array (block_shape == array dims), so the
    # (8,128) divisibility constraint does not apply; no grid needed.
    spec = pl.BlockSpec(flat_shape, lambda: (0, 0))

    out = pl.pallas_call(
        _add3_kernel,
        out_shape=jax.ShapeDtypeStruct(flat_shape, x448.dtype),
        grid=(),
        in_specs=[spec, spec, spec],
        out_specs=spec,
        # Alias x464 (input index 2) with the output buffer.
        input_output_aliases={2: 0},
    )(a, b, c)

    return out.reshape(orig_shape)


if __name__ == "__main__":
    key = jax.random.PRNGKey(0)
    k1, k2, k3 = jax.random.split(key, 3)

    shape = (1, 272, 7, 7)
    x433 = jax.random.normal(k1, shape, dtype=jnp.float32)
    x448 = jax.random.normal(k2, shape, dtype=jnp.float32)
    x464 = jax.random.normal(k3, shape, dtype=jnp.float32)

    # Compute the reference BEFORE the kernel call, since the kernel may alias
    # (and thus consume) x464's buffer via input_output_aliases.
    ref = x464 + (x448 + x433)

    out = add3(x448, x433, x464)
    jax.block_until_ready(out)

    assert out.shape == shape
    assert jnp.allclose(out, ref, atol=1e-6), "mismatch vs reference"

    print("KERNEL_OK")
</pallas_src>

<mosaic_0001>
module attributes {stable_mosaic.version = 11 : i64} {
  func.func @_add3_kernel(%arg0: memref<8x1666xf32, #tpu.memory_space<vmem>>, %arg1: memref<8x1666xf32, #tpu.memory_space<vmem>>, %arg2: memref<8x1666xf32, #tpu.memory_space<vmem>>, %arg3: memref<8x1666xf32, #tpu.memory_space<vmem>>) attributes {dimension_semantics = [], scalar_prefetch = 0 : i64, scratch_operands = 0 : i64, tpu.core_type = #tpu.core_type<tc>} {
    %c0 = arith.constant 0 : index
    %c0_0 = arith.constant 0 : index
    %0 = vector.load %arg2[%c0, %c0_0] : memref<8x1666xf32, #tpu.memory_space<vmem>>, vector<8x1666xf32>
    %c0_1 = arith.constant 0 : index
    %c0_2 = arith.constant 0 : index
    %1 = vector.load %arg0[%c0_1, %c0_2] : memref<8x1666xf32, #tpu.memory_space<vmem>>, vector<8x1666xf32>
    %c0_3 = arith.constant 0 : index
    %c0_4 = arith.constant 0 : index
    %2 = vector.load %arg1[%c0_3, %c0_4] : memref<8x1666xf32, #tpu.memory_space<vmem>>, vector<8x1666xf32>
    %3 = arith.addf %1, %2 : vector<8x1666xf32>
    %4 = arith.addf %0, %3 : vector<8x1666xf32>
    %c0_5 = arith.constant 0 : index
    %c0_6 = arith.constant 0 : index
    %5 = vector.load %arg3[%c0_5, %c0_6] : memref<8x1666xf32, #tpu.memory_space<vmem>>, vector<8x1666xf32>
    tpu.vector_store %arg3[%c0_5, %c0_6], %4 {strides = array<i32>} : memref<8x1666xf32, #tpu.memory_space<vmem>>, vector<8x1666xf32>,
    return
  }
}

</mosaic_0001>

<llo_original>
// kernel: tpu_custom_call.1
$region0: #{tpu_custom_call.1}
  #allocation0 [shape = 'u32[]', space=smem, size = 0x4, offset = 0x4, fixed_abs, tag = 'smem constant byte address 0x4 - core index']
  #allocation1 [shape = 'u32[72,128]{1,0:T(1,128)}', space=vmem, size = 0x9000, scoped, tag = 'internal scratch']
  %s0 = inlined_call_operand.vmem [shape: f32[8,1666], index: 0, kind: input, shape index: {}]
  %s1 = inlined_call_operand.vmem [shape: f32[8,1666], index: 1, kind: input, shape index: {}]
  %s2 = inlined_call_operand.hbm [shape: f32[8,1666], index: 2, kind: input, shape index: {}, may-alias: {2,3}]
  %s3 = inlined_call_operand.hbm [shape: f32[8,1666], index: 3, kind: output, shape index: {}, may-alias: {2,3}]
  %s4 = sld [smem:[#allocation0]]
  $region26: #{tpu_custom_call.1} parent=0
    _
  %s6 = ssub.s32 1, %s4
  %s7 = scalar_select 0, %s6, %s4
  $region1: #{tpu_custom_call.1} parent=0
    #allocation2 [shape = 'u8[57344]{0}', space=vmem, size = 0xe000, scoped, tag = 'input window, operand 2, single buffered']
    #allocation3 [shape = 's32[1]{0}', space=sflag, size = 0x4, scoped, tag = 'scoped memory for tpu_custom_call.1']
    #allocation4 [shape = 's32[1]{0}', space=sflag, size = 0x4, scoped, tag = 'scoped memory for tpu_custom_call.1']
    #allocation5 [shape = 'u8[57344]{0}', space=vmem, size = 0xe000, scoped, tag = 'output window, operand 0, single buffered']
    %8 = vsyncpa [#allocation3], 0
    %9 = vsyncpa [#allocation4], 0
    // Predicated region
    $region2: #{tpu_custom_call.1} parent=1 // pred_check
      _
    $region3: #{tpu_custom_call.1} parent=1 // pred_check_branch
      %11 = sbr.rel (0) target = $region5
    $region4: #{tpu_custom_call.1} parent=1 // pred_region
      _
    $region5: #{tpu_custom_call.1} parent=1 // pred_fallthru
      _
    // Predicated region
    $region6: #{tpu_custom_call.1} parent=1 // pred_check
      _
    $region7: #{tpu_custom_call.1} parent=1 // pred_check_branch
      %13 = sbr.rel (0) target = $region9
    $region8: #{tpu_custom_call.1} parent=1 // pred_region
      _
    $region9: #{tpu_custom_call.1} parent=1 // pred_fallthru
      _
    // Predicated region
    $region10: #{tpu_custom_call.1} parent=1 // pred_check
      _
    $region11: #{tpu_custom_call.1} parent=1 // pred_check_branch
      %15 = sbr.rel (0) target = $region13
    $region12: #{tpu_custom_call.1} parent=1 // pred_region
      %17 = vsyncadd [#allocation3], 0
      %s19 = sshll.u32 %s2, 4
      %s20 = int_to_ptr.hbm [resolvable:$true] %s19
      %s21 = sshll.u32 [#allocation2], 4
      %s22 = int_to_ptr.vmem [resolvable:$true] %s21
      %24 = dma.hbm_to_vmem [thread:$0]  %s20, 1792, %s22, [#allocation3]
    $region13: #{tpu_custom_call.1} parent=1 // pred_fallthru
      _
    // Predicated region
    $region14: #{tpu_custom_call.1} parent=1 // pred_check
      _
    $region15: #{tpu_custom_call.1} parent=1 // pred_check_branch
      %26 = sbr.rel (0) target = $region17
    $region16: #{tpu_custom_call.1} parent=1 // pred_region
      %28 = dma.done [#allocation3], 1792
    $region17: #{tpu_custom_call.1} parent=1 // pred_fallthru
      _
    %v29 = vld [vmem:[#allocation2] sm:$0xff]
    %v30 = vld [vmem:[#allocation2 + $0x8] sm:$0xff]
    %v31 = vld [vmem:[#allocation2 + $0x10] sm:$0xff]
    %v32 = vld [vmem:[#allocation2 + $0x18] sm:$0xff]
    %v33 = vld [vmem:[#allocation2 + $0x20] sm:$0xff]
    %v34 = vld [vmem:[#allocation2 + $0x28] sm:$0xff]
    %v35 = vld [vmem:[#allocation2 + $0x30] sm:$0xff]
    %v36 = vld [vmem:[#allocation2 + $0x38] sm:$0xff]
    %v37 = vld [vmem:[#allocation2 + $0x40] sm:$0xff]
    %v38 = vld [vmem:[#allocation2 + $0x48] sm:$0xff]
    %v39 = vld [vmem:[#allocation2 + $0x50] sm:$0xff]
    %v40 = vld [vmem:[#allocation2 + $0x58] sm:$0xff]
    %v41 = vld [vmem:[#allocation2 + $0x60] sm:$0xff]
    %v42 = vld [vmem:[#allocation2 + $0x68] sm:$0xff]
    %v43 = vld [vmem:[%s0] sm:$0xff]
    %v44 = vld [vmem:[%s0 + $0x8] sm:$0xff]
    %v45 = vld [vmem:[%s0 + $0x10] sm:$0xff]
    %v46 = vld [vmem:[%s0 + $0x18] sm:$0xff]
    %v47 = vld [vmem:[%s0 + $0x20] sm:$0xff]
    %v48 = vld [vmem:[%s0 + $0x28] sm:$0xff]
    %v49 = vld [vmem:[%s0 + $0x30] sm:$0xff]
    %v50 = vld [vmem:[%s0 + $0x38] sm:$0xff]
    %v51 = vld [vmem:[%s0 + $0x40] sm:$0xff]
    %v52 = vld [vmem:[%s0 + $0x48] sm:$0xff]
    %v53 = vld [vmem:[%s0 + $0x50] sm:$0xff]
    %v54 = vld [vmem:[%s0 + $0x58] sm:$0xff]
    %v55 = vld [vmem:[%s0 + $0x60] sm:$0xff]
    %v56 = vld [vmem:[%s0 + $0x68] sm:$0xff]
    %v57 = vld [vmem:[%s1] sm:$0xff]
    %v58 = vld [vmem:[%s1 + $0x8] sm:$0xff]
    %v59 = vld [vmem:[%s1 + $0x10] sm:$0xff]
    %v60 = vld [vmem:[%s1 + $0x18] sm:$0xff]
    %v61 = vld [vmem:[%s1 + $0x20] sm:$0xff]
    %v62 = vld [vmem:[%s1 + $0x28] sm:$0xff]
    %v63 = vld [vmem:[%s1 + $0x30] sm:$0xff]
    %v64 = vld [vmem:[%s1 + $0x38] sm:$0xff]
    %v65 = vld [vmem:[%s1 + $0x40] sm:$0xff]
    %v66 = vld [vmem:[%s1 + $0x48] sm:$0xff]
    %v67 = vld [vmem:[%s1 + $0x50] sm:$0xff]
    %v68 = vld [vmem:[%s1 + $0x58] sm:$0xff]
    %v69 = vld [vmem:[%s1 + $0x60] sm:$0xff]
    %v70 = vld [vmem:[%s1 + $0x68] sm:$0xff]
    %v71 = vadd.f32 %v43, %v57
    %v72 = vadd.f32 %v44, %v58
    %v73 = vadd.f32 %v45, %v59
    %v74 = vadd.f32 %v46, %v60
    %v75 = vadd.f32 %v47, %v61
    %v76 = vadd.f32 %v48, %v62
    %v77 = vadd.f32 %v49, %v63
    %v78 = vadd.f32 %v50, %v64
    %v79 = vadd.f32 %v51, %v65
    %v80 = vadd.f32 %v52, %v66
    %v81 = vadd.f32 %v53, %v67
    %v82 = vadd.f32 %v54, %v68
    %v83 = vadd.f32 %v55, %v69
    %v84 = vadd.f32 %v56, %v70
    %v85 = vadd.f32 %v29, %v71
    %v86 = vadd.f32 %v30, %v72
    %v87 = vadd.f32 %v31, %v73
    %v88 = vadd.f32 %v32, %v74
    %v89 = vadd.f32 %v33, %v75
    %v90 = vadd.f32 %v34, %v76
    %v91 = vadd.f32 %v35, %v77
    %v92 = vadd.f32 %v36, %v78
    %v93 = vadd.f32 %v37, %v79
    %v94 = vadd.f32 %v38, %v80
    %v95 = vadd.f32 %v39, %v81
    %v96 = vadd.f32 %v40, %v82
    %v97 = vadd.f32 %v41, %v83
    %v98 = vadd.f32 %v42, %v84
    %99 = vst [vmem:[#allocation5] sm:$0xff] %v85
    %100 = vst [vmem:[#allocation5 + $0x8] sm:$0xff] %v86
    %101 = vst [vmem:[#allocation5 + $0x10] sm:$0xff] %v87
    %102 = vst [vmem:[#allocation5 + $0x18] sm:$0xff] %v88
    %103 = vst [vmem:[#allocation5 + $0x20] sm:$0xff] %v89
    %104 = vst [vmem:[#allocation5 + $0x28] sm:$0xff] %v90
    %105 = vst [vmem:[#allocation5 + $0x30] sm:$0xff] %v91
    %106 = vst [vmem:[#allocation5 + $0x38] sm:$0xff] %v92
    %107 = vst [vmem:[#allocation5 + $0x40] sm:$0xff] %v93
    %108 = vst [vmem:[#allocation5 + $0x48] sm:$0xff] %v94
    %109 = vst [vmem:[#allocation5 + $0x50] sm:$0xff] %v95
    %110 = vst [vmem:[#allocation5 + $0x58] sm:$0xff] %v96
    %111 = vst [vmem:[#allocation5 + $0x60] sm:$0xff] %v97
    %vm112 = vcmask 15360
    %113 = vst.msk [vmem:[#allocation5 + $0x68] sm:$0xff] %vm112, %v98
    // Predicated region
    $region18: #{tpu_custom_call.1} parent=1 // pred_check
      _
    $region19: #{tpu_custom_call.1} parent=1 // pred_check_branch
      %115 = sbr.rel (0) target = $region21
    $region20: #{tpu_custom_call.1} parent=1 // pred_region
      %117 = vsyncadd [#allocation4], 0
      %s119 = sshll.u32 [#allocation5], 4
      %s120 = int_to_ptr.vmem [resolvable:$true] %s119
      %s121 = sshll.u32 %s3, 4
      %s122 = int_to_ptr.hbm [resolvable:$true] %s121
      %124 = dma.vmem_to_hbm [thread:$0]  %s120, 1792, %s122, [#allocation4]
    $region21: #{tpu_custom_call.1} parent=1 // pred_fallthru
      _
    // Predicated region
    $region22: #{tpu_custom_call.1} parent=1 // pred_check
      _
    $region23: #{tpu_custom_call.1} parent=1 // pred_check_branch
      %126 = sbr.rel (0) target = $region25
    $region24: #{tpu_custom_call.1} parent=1 // pred_region
      %128 = dma.done [#allocation4], 1792
    $region25: #{tpu_custom_call.1} parent=1 // pred_fallthru
      _
    %129 = vsyncpa [#allocation3], 1
    %130 = vsyncpa [#allocation4], 1

</llo_original>
